<compile_context>
chip_gen: v7x
topology: tpu7x:2x2x1
jax: 0.10.0
libtpu: 0.0.40
codegen_flags: <defaults>
</compile_context>

<pallas_src>
import functools
import jax
import jax.numpy as jnp
from jax.experimental import pallas as pl
from jax.experimental.pallas import tpu as pltpu

_EPS = 1e-9


def _iou_aware_loss_kernel(ioup_ref, p_ref, g_ref, out_ref, *, loss_weight):
    # Planar coordinate maps: one (bm, lanes) tile per coordinate.
    px1 = p_ref[0]; py1 = p_ref[1]; px2 = p_ref[2]; py2 = p_ref[3]
    gx1 = g_ref[0]; gy1 = g_ref[1]; gx2 = g_ref[2]; gy2 = g_ref[3]

    # --- bbox_iou (plain IoU, eps=1e-9) ---
    x1 = jnp.maximum(px1, gx1)
    y1 = jnp.maximum(py1, gy1)
    x2 = jnp.minimum(px2, gx2)
    y2 = jnp.minimum(py2, gy2)

    overlap = jnp.maximum(x2 - x1, 0.0) * jnp.maximum(y2 - y1, 0.0)
    area1 = jnp.maximum((px2 - px1) * (py2 - py1), 0.0)
    area2 = jnp.maximum((gx2 - gx1) * (gy2 - gy1), 0.0)
    union = area1 + area2 - overlap + _EPS

    # Exact f32 divide: kernel is memory-bound, the Newton iterations are free
    # filler under the HBM slack and keep parity with the PyTorch reference.
    iou = overlap / union

    # --- binary_cross_entropy_with_logits(ioup, iou, reduction='none') ---
    # numerically stable: max(x,0) - x*t + log(1 + exp(-|x|))
    x = ioup_ref[...]
    bce = jnp.maximum(x, 0.0) - x * iou + jnp.log1p(jnp.exp(-jnp.abs(x)))

    if loss_weight != 1.0:  # static Python specialization (loss_weight is a float)
        bce = bce * loss_weight
    out_ref[...] = bce


def _pick_lanes(n, max_lanes):
    """Largest multiple of 128 (<= max_lanes) that divides n, else 0."""
    lanes = (max_lanes // 128) * 128
    while lanes >= 128:
        if n % lanes == 0:
            return lanes
        lanes -= 128
    return 0


def _round_up(x, m):
    return (x + m - 1) // m * m


def _tpu_generation():
    """Best-effort TPU generation (5/6/7/...), or None if unknown / non-TPU."""
    try:
        kind = jax.devices()[0].device_kind.lower()
    except Exception:
        return None
    for tag, gen in (("v7", 7), ("v6", 6), ("v5", 5), ("v4", 4)):
        if tag in kind:
            return gen
    return None


def _select_tiling(block_elems):
    """Per-generation block size (f32 elems per scalar stream) + VMEM limit."""
    if block_elems is None:
        gen = _tpu_generation()
        if gen is not None and gen >= 7:
            block_elems = 512 * 1024    # ~40 MiB double-buffered; 64 MiB VMEM chip
        elif gen == 6:
            block_elems = 256 * 1024    # ~20 MiB double-buffered
        else:                           # v5e / unknown / interpret: conservative
            block_elems = 128 * 1024    # ~10 MiB double-buffered
    # 10 f32 streams (ioup, out, 4+4 box planes), double-buffered, +50% headroom.
    resident = 10 * 2 * 4 * block_elems
    vmem_limit = int(min(48 << 20, max(24 << 20, resident + resident // 2)))
    return block_elems, vmem_limit


def iou_aware_loss(ioup, pbox, gbox, *, loss_weight=1.0,
                   max_lanes=1024, block_elems=None):
    """IoU-aware loss forward (reduction='none').

    ioup : arbitrary-shape array of raw iou-prediction logits.
    pbox, gbox : boxes in PLANAR (coordinate-major) layout [4, *ioup.shape]
        with coords (x1, y1, x2, y2).  Interleaved [..., 4] layouts must be
        transposed once at the producer, NOT per loss call (a per-call
        transpose would add a full extra HBM pass to a memory-bound op).
    loss_weight : static Python float (specialized into the kernel).
    Returns an array with ioup's shape (loss per element).
    """
    loss_weight = float(loss_weight)  # must be static; raises loudly if traced
    f32 = jnp.float32
    shape = ioup.shape
    n = ioup.size

    expected = (4,) + shape
    if pbox.shape != expected or gbox.shape != expected:
        raise ValueError(
            f"boxes must be coordinate-major {expected}; got pbox {pbox.shape}, "
            f"gbox {gbox.shape}. Transpose interleaved boxes once upstream.")

    ioup_f = ioup.astype(f32).reshape(n)
    p = pbox.astype(f32).reshape(4, n)
    g = gbox.astype(f32).reshape(4, n)

    # Retile the flat element axis into a lane-dense [rows, lanes] slab.
    lanes = _pick_lanes(n, max_lanes)
    if lanes == 0:
        # Ragged element count (n not a multiple of 128): rare for detection
        # heads; pad up to one lane group.
        # TODO(synk): handle the ragged tail in-kernel (scalar-prefetch n and
        # mask the last block) to avoid the extra padded HBM pass.
        lanes = 128
        pad = (-n) % lanes
        ioup_f = jnp.pad(ioup_f, (0, pad))
        p = jnp.pad(p, ((0, 0), (0, pad)))
        g = jnp.pad(g, ((0, 0), (0, pad)))
    rows = ioup_f.size // lanes

    ioup2 = ioup_f.reshape(rows, lanes)
    p2 = p.reshape(4, rows, lanes)
    g2 = g.reshape(4, rows, lanes)

    block_elems, vmem_limit = _select_tiling(block_elems)

    # Block rows: multiple of 8 targeting ~block_elems f32 per scalar stream.
    bm_target = max(8, (block_elems // lanes) // 8 * 8)
    if rows <= bm_target:
        if rows >= 128:
            # Whole problem fits one block but is big enough to care: split it
            # so "parallel" sharding (megacore / v7x dual-TC) has >1 grid step.
            bm = _round_up(pl.cdiv(rows, 2), 8)
        else:
            bm = rows              # tiny input: single full-extent block
    else:
        bm = bm_target
    grid = (pl.cdiv(rows, bm),)
    # Note: when rows % bm != 0 the trailing grid step is a Pallas edge block;
    # the kernel is purely elementwise so overread rows are discarded by the
    # masked writeback (no semantic OOB).

    val_spec = pl.BlockSpec((bm, lanes), lambda i: (i, 0))
    box_spec = pl.BlockSpec((4, bm, lanes), lambda i: (0, i, 0))

    kernel = functools.partial(_iou_aware_loss_kernel, loss_weight=loss_weight)

    out = pl.pallas_call(
        kernel,
        out_shape=jax.ShapeDtypeStruct((rows, lanes), f32),
        grid_spec=pltpu.PrefetchScalarGridSpec(
            num_scalar_prefetch=0,
            grid=grid,
            in_specs=[val_spec, box_spec, box_spec],
            out_specs=val_spec,
        ),
        compiler_params=pltpu.CompilerParams(
            dimension_semantics=("parallel",),
            vmem_limit_bytes=vmem_limit,
        ),
        cost_estimate=pl.CostEstimate(
            flops=20 * n, transcendentals=3 * n, bytes_accessed=40 * n),
    )(ioup2, p2, g2)

    out = out.reshape(-1)[:n].reshape(shape)
    if out.dtype != ioup.dtype:
        out = out.astype(ioup.dtype)
    return out


def _reference(ioup, pbox_planar, gbox_planar, loss_weight=1.0):
    """Pure-JAX reference mirroring the PyTorch module (exact divide)."""
    px1, py1, px2, py2 = [pbox_planar[i] for i in range(4)]
    gx1, gy1, gx2, gy2 = [gbox_planar[i] for i in range(4)]
    x1 = jnp.maximum(px1, gx1); y1 = jnp.maximum(py1, gy1)
    x2 = jnp.minimum(px2, gx2); y2 = jnp.minimum(py2, gy2)
    overlap = jnp.maximum(x2 - x1, 0.0) * jnp.maximum(y2 - y1, 0.0)
    area1 = jnp.maximum((px2 - px1) * (py2 - py1), 0.0)
    area2 = jnp.maximum((gx2 - gx1) * (gy2 - gy1), 0.0)
    iou = overlap / (area1 + area2 - overlap + _EPS)
    x = ioup
    bce = jnp.maximum(x, 0.0) - x * iou + jnp.log1p(jnp.exp(-jnp.abs(x)))
    return bce * loss_weight


if __name__ == "__main__":
    key = jax.random.PRNGKey(0)
    k1, k2, k3, k4 = jax.random.split(key, 4)

    # Small detection-head-like shape: batch=2, anchors=3, 16x16 grid.
    B, A, H, W = 2, 3, 16, 16
    shape = (B, A, H, W)

    # ioup: raw iou-prediction logits.
    ioup = jax.random.normal(k1, shape, dtype=jnp.float32)

    # Boxes in PLANAR (coordinate-major) layout [4, B, A, H, W] = (x1, y1, x2, y2).
    pc = jax.random.uniform(k2, (2,) + shape, minval=0.0, maxval=10.0)
    pwh = jax.random.uniform(k3, (2,) + shape, minval=0.5, maxval=4.0)
    pbox = jnp.concatenate([pc - pwh * 0.5, pc + pwh * 0.5], axis=0).astype(jnp.float32)

    gc = pc + jax.random.normal(k4, (2,) + shape) * 0.5
    gwh = pwh * 1.1
    gbox = jnp.concatenate([gc - gwh * 0.5, gc + gwh * 0.5], axis=0).astype(jnp.float32)

    # loss_weight = 1.0 (IouAwareLoss default).
    out = iou_aware_loss(ioup, pbox, gbox, loss_weight=1.0)
    out = jax.block_until_ready(out)
    ref = _reference(ioup, pbox, gbox, loss_weight=1.0)
    assert out.shape == shape
    assert jnp.allclose(out, ref, atol=1e-5, rtol=1e-5), "mismatch vs reference (w=1.0)"

    # Non-unit loss_weight path (exercises the static specialization branch).
    out_w = iou_aware_loss(ioup, pbox, gbox, loss_weight=2.5)
    out_w = jax.block_until_ready(out_w)
    ref_w = _reference(ioup, pbox, gbox, loss_weight=2.5)
    assert jnp.allclose(out_w, ref_w, atol=1e-5, rtol=1e-5), "mismatch vs reference (w=2.5)"

    print("KERNEL_OK")
</pallas_src>

<mosaic_0001>
module attributes {stable_mosaic.version = 11 : i64} {
  func.func @_iou_aware_loss_kernel(%arg0: i32, %arg1: memref<2x768xf32, #tpu.memory_space<vmem>>, %arg2: memref<4x2x768xf32, #tpu.memory_space<vmem>>, %arg3: memref<4x2x768xf32, #tpu.memory_space<vmem>>, %arg4: memref<2x768xf32, #tpu.memory_space<vmem>>) attributes {dimension_semantics = [#tpu.dimension_semantics<parallel>], iteration_bounds = array<i64: 1>, scalar_prefetch = 0 : i64, scratch_operands = 0 : i64, tpu.core_type = #tpu.core_type<tc>, window_params = [{transform_indices = @transform_0, window_bounds = array<i64: 2, 768>}, {transform_indices = @transform_1, window_bounds = array<i64: 4, 2, 768>}, {transform_indices = @transform_2, window_bounds = array<i64: 4, 2, 768>}, {transform_indices = @transform_3, window_bounds = array<i64: 2, 768>}]} {
    %c0 = arith.constant 0 : index
    %c0_0 = arith.constant 0 : index
    %c0_1 = arith.constant 0 : index
    %0 = vector.load %arg2[%c0, %c0_0, %c0_1] : memref<4x2x768xf32, #tpu.memory_space<vmem>>, vector<1x2x768xf32>
    %1 = vector.shape_cast %0 : vector<1x2x768xf32> to vector<2x768xf32>
    %c1 = arith.constant 1 : index
    %c0_2 = arith.constant 0 : index
    %c0_3 = arith.constant 0 : index
    %2 = vector.load %arg2[%c1, %c0_2, %c0_3] : memref<4x2x768xf32, #tpu.memory_space<vmem>>, vector<1x2x768xf32>
    %3 = vector.shape_cast %2 : vector<1x2x768xf32> to vector<2x768xf32>
    %c2 = arith.constant 2 : index
    %c0_4 = arith.constant 0 : index
    %c0_5 = arith.constant 0 : index
    %4 = vector.load %arg2[%c2, %c0_4, %c0_5] : memref<4x2x768xf32, #tpu.memory_space<vmem>>, vector<1x2x768xf32>
    %5 = vector.shape_cast %4 : vector<1x2x768xf32> to vector<2x768xf32>
    %c3 = arith.constant 3 : index
    %c0_6 = arith.constant 0 : index
    %c0_7 = arith.constant 0 : index
    %6 = vector.load %arg2[%c3, %c0_6, %c0_7] : memref<4x2x768xf32, #tpu.memory_space<vmem>>, vector<1x2x768xf32>
    %7 = vector.shape_cast %6 : vector<1x2x768xf32> to vector<2x768xf32>
    %c0_8 = arith.constant 0 : index
    %c0_9 = arith.constant 0 : index
    %c0_10 = arith.constant 0 : index
    %8 = vector.load %arg3[%c0_8, %c0_9, %c0_10] : memref<4x2x768xf32, #tpu.memory_space<vmem>>, vector<1x2x768xf32>
    %9 = vector.shape_cast %8 : vector<1x2x768xf32> to vector<2x768xf32>
    %c1_11 = arith.constant 1 : index
    %c0_12 = arith.constant 0 : index
    %c0_13 = arith.constant 0 : index
    %10 = vector.load %arg3[%c1_11, %c0_12, %c0_13] : memref<4x2x768xf32, #tpu.memory_space<vmem>>, vector<1x2x768xf32>
    %11 = vector.shape_cast %10 : vector<1x2x768xf32> to vector<2x768xf32>
    %c2_14 = arith.constant 2 : index
    %c0_15 = arith.constant 0 : index
    %c0_16 = arith.constant 0 : index
    %12 = vector.load %arg3[%c2_14, %c0_15, %c0_16] : memref<4x2x768xf32, #tpu.memory_space<vmem>>, vector<1x2x768xf32>
    %13 = vector.shape_cast %12 : vector<1x2x768xf32> to vector<2x768xf32>
    %c3_17 = arith.constant 3 : index
    %c0_18 = arith.constant 0 : index
    %c0_19 = arith.constant 0 : index
    %14 = vector.load %arg3[%c3_17, %c0_18, %c0_19] : memref<4x2x768xf32, #tpu.memory_space<vmem>>, vector<1x2x768xf32>
    %15 = vector.shape_cast %14 : vector<1x2x768xf32> to vector<2x768xf32>
    %16 = arith.maximumf %1, %9 : vector<2x768xf32>
    %17 = arith.maximumf %3, %11 : vector<2x768xf32>
    %18 = arith.minimumf %5, %13 : vector<2x768xf32>
    %19 = arith.minimumf %7, %15 : vector<2x768xf32>
    %20 = arith.subf %18, %16 : vector<2x768xf32>
    %cst = arith.constant 0.000000e+00 : f32
    %21 = vector.broadcast %cst : f32 to vector<2x768xf32>
    %22 = arith.maximumf %20, %21 : vector<2x768xf32>
    %23 = arith.subf %19, %17 : vector<2x768xf32>
    %cst_20 = arith.constant 0.000000e+00 : f32
    %24 = vector.broadcast %cst_20 : f32 to vector<2x768xf32>
    %25 = arith.maximumf %23, %24 : vector<2x768xf32>
    %26 = arith.mulf %22, %25 : vector<2x768xf32>
    %27 = arith.subf %5, %1 : vector<2x768xf32>
    %28 = arith.subf %7, %3 : vector<2x768xf32>
    %29 = arith.mulf %27, %28 : vector<2x768xf32>
    %cst_21 = arith.constant 0.000000e+00 : f32
    %30 = vector.broadcast %cst_21 : f32 to vector<2x768xf32>
    %31 = arith.maximumf %29, %30 : vector<2x768xf32>
    %32 = arith.subf %13, %9 : vector<2x768xf32>
    %33 = arith.subf %15, %11 : vector<2x768xf32>
    %34 = arith.mulf %32, %33 : vector<2x768xf32>
    %cst_22 = arith.constant 0.000000e+00 : f32
    %35 = vector.broadcast %cst_22 : f32 to vector<2x768xf32>
    %36 = arith.maximumf %34, %35 : vector<2x768xf32>
    %37 = arith.addf %31, %36 : vector<2x768xf32>
    %38 = arith.subf %37, %26 : vector<2x768xf32>
    %cst_23 = arith.constant 9.99999971E-10 : f32
    %39 = vector.broadcast %cst_23 : f32 to vector<2x768xf32>
    %40 = arith.addf %38, %39 : vector<2x768xf32>
    %41 = arith.divf %26, %40 : vector<2x768xf32>
    %c0_24 = arith.constant 0 : index
    %c0_25 = arith.constant 0 : index
    %42 = vector.load %arg1[%c0_24, %c0_25] : memref<2x768xf32, #tpu.memory_space<vmem>>, vector<2x768xf32>
    %cst_26 = arith.constant 0.000000e+00 : f32
    %43 = vector.broadcast %cst_26 : f32 to vector<2x768xf32>
    %44 = arith.maximumf %42, %43 : vector<2x768xf32>
    %45 = arith.mulf %42, %41 : vector<2x768xf32>
    %46 = arith.subf %44, %45 : vector<2x768xf32>
    %47 = math.absf %42 : vector<2x768xf32>
    %cst_27 = arith.constant 0.000000e+00 : f32
    %48 = vector.broadcast %cst_27 : f32 to vector<2x768xf32>
    %49 = arith.subf %48, %47 : vector<2x768xf32>
    %50 = math.exp %49 : vector<2x768xf32>
    %51 = math.log1p %50 : vector<2x768xf32>
    %52 = arith.addf %46, %51 : vector<2x768xf32>
    %c0_28 = arith.constant 0 : index
    %c0_29 = arith.constant 0 : index
    %53 = vector.load %arg4[%c0_28, %c0_29] : memref<2x768xf32, #tpu.memory_space<vmem>>, vector<2x768xf32>
    tpu.vector_store %arg4[%c0_28, %c0_29], %52 {strides = array<i32>} : memref<2x768xf32, #tpu.memory_space<vmem>>, vector<2x768xf32>,
    return
  }
  func.func @transform_0(%arg0: i32) -> (i32, i32) {
    %c0_i32 = arith.constant 0 : i32
    %c0_i32_0 = arith.constant 0 : i32
    return %arg0, %c0_i32 : i32, i32
  }
  func.func @transform_1(%arg0: i32) -> (i32, i32, i32) {
    %c0_i32 = arith.constant 0 : i32
    %c0_i32_0 = arith.constant 0 : i32
    %c0_i32_1 = arith.constant 0 : i32
    return %c0_i32, %arg0, %c0_i32_0 : i32, i32, i32
  }
  func.func @transform_2(%arg0: i32) -> (i32, i32, i32) {
    %c0_i32 = arith.constant 0 : i32
    %c0_i32_0 = arith.constant 0 : i32
    %c0_i32_1 = arith.constant 0 : i32
    return %c0_i32, %arg0, %c0_i32_0 : i32, i32, i32
  }
  func.func @transform_3(%arg0: i32) -> (i32, i32) {
    %c0_i32 = arith.constant 0 : i32
    %c0_i32_0 = arith.constant 0 : i32
    return %arg0, %c0_i32 : i32, i32
  }
}

</mosaic_0001>

<llo_original>
// kernel: tpu_custom_call.1
$region0: #{tpu_custom_call.1}
  #allocation0 [shape = 'u32[]', space=smem, size = 0x4, offset = 0x4, fixed_abs, tag = 'smem constant byte address 0x4 - core index']
  #allocation1 [shape = 'u32[144,128]{1,0:T(1,128)}', space=vmem, size = 0x12000, scoped, tag = 'internal scratch']
  %s0 = inlined_call_operand.hbm [shape: f32[2,768], index: 0, kind: input, shape index: {}]
  %s1 = inlined_call_operand.hbm [shape: f32[4,2,768], index: 1, kind: input, shape index: {}]
  %s2 = inlined_call_operand.hbm [shape: f32[4,2,768], index: 2, kind: input, shape index: {}]
  %s3 = inlined_call_operand.hbm [shape: f32[2,768], index: 3, kind: output, shape index: {}]
  %s4 = sld [smem:[#allocation0]]
  $region34: #{tpu_custom_call.1} parent=0
    _
  %s6 = ssub.s32 1, %s4
  %s7 = scalar_select 0, %s6, %s4
  $region1: #{tpu_custom_call.1} parent=0
    #allocation2 [shape = 'u8[6144]{0}', space=vmem, size = 0x1800, scoped, tag = 'input window, operand 0, single buffered']
    #allocation3 [shape = 's32[1]{0}', space=sflag, size = 0x4, scoped, tag = 'scoped memory for tpu_custom_call.1']
    #allocation4 [shape = 's32[1]{0}', space=sflag, size = 0x4, scoped, tag = 'scoped memory for tpu_custom_call.1']
    #allocation5 [shape = 'u8[24576]{0}', space=vmem, size = 0x6000, scoped, tag = 'input window, operand 1, single buffered']
    #allocation6 [shape = 's32[1]{0}', space=sflag, size = 0x4, scoped, tag = 'scoped memory for tpu_custom_call.1']
    #allocation7 [shape = 'u8[24576]{0}', space=vmem, size = 0x6000, scoped, tag = 'input window, operand 2, single buffered']
    #allocation8 [shape = 'u8[6144]{0}', space=vmem, size = 0x1800, scoped, tag = 'output window, operand 0, single buffered']
    %8 = vsyncpa [#allocation3], 0
    %9 = vsyncpa [#allocation6], 0
    %10 = vsyncpa [#allocation4], 0
    // Predicated region
    $region2: #{tpu_custom_call.1} parent=1 // pred_check
      _
    $region3: #{tpu_custom_call.1} parent=1 // pred_check_branch
      %12 = sbr.rel (0) target = $region5
    $region4: #{tpu_custom_call.1} parent=1 // pred_region
      %s14 = ssub.s32 192, 192
      %15 = vsyncadd [#allocation3], %s14
      %s17 = sshll.u32 [#allocation2], 4
      %s18 = int_to_ptr.vmem [resolvable:$true] %s17
      %20 = dma.hbm_to_vmem [thread:$0]  %s0, 192, %s18, [#allocation3]
    $region5: #{tpu_custom_call.1} parent=1 // pred_fallthru
      _
    // Predicated region
    $region6: #{tpu_custom_call.1} parent=1 // pred_check
      _
    $region7: #{tpu_custom_call.1} parent=1 // pred_check_branch
      %22 = sbr.rel (0) target = $region9
    $region8: #{tpu_custom_call.1} parent=1 // pred_region
      %s24 = ssub.s32 768, 768
      %25 = vsyncadd [#allocation6], %s24
      %s26 = sshll.u32 [#allocation5], 4
      %s27 = int_to_ptr.vmem [resolvable:$true] %s26
      %32 = dma.hbm_to_vmem [thread:$0]  %s1, 768, %s27, [#allocation6], 192, 192, 12
    $region9: #{tpu_custom_call.1} parent=1 // pred_fallthru
      _
    // Predicated region
    $region10: #{tpu_custom_call.1} parent=1 // pred_check
      _
    $region11: #{tpu_custom_call.1} parent=1 // pred_check_branch
      %34 = sbr.rel (0) target = $region13
    $region12: #{tpu_custom_call.1} parent=1 // pred_region
      %s36 = ssub.s32 768, 768
      %37 = vsyncadd [#allocation6], %s36
      %s38 = sshll.u32 [#allocation7], 4
      %s39 = int_to_ptr.vmem [resolvable:$true] %s38
      %44 = dma.hbm_to_vmem [thread:$0]  %s2, 768, %s39, [#allocation6], 192, 192, 12
    $region13: #{tpu_custom_call.1} parent=1 // pred_fallthru
      _
    // Predicated region
    $region14: #{tpu_custom_call.1} parent=1 // pred_check
      _
    $region15: #{tpu_custom_call.1} parent=1 // pred_check_branch
      %46 = sbr.rel (0) target = $region17
    $region16: #{tpu_custom_call.1} parent=1 // pred_region
      %47 = dma.done [#allocation3], 192
    $region17: #{tpu_custom_call.1} parent=1 // pred_fallthru
      _
    // Predicated region
    $region18: #{tpu_custom_call.1} parent=1 // pred_check
      _
    $region19: #{tpu_custom_call.1} parent=1 // pred_check_branch
      %49 = sbr.rel (0) target = $region21
    $region20: #{tpu_custom_call.1} parent=1 // pred_region
      %50 = dma.done [#allocation6], 768
    $region21: #{tpu_custom_call.1} parent=1 // pred_fallthru
      _
    // Predicated region
    $region22: #{tpu_custom_call.1} parent=1 // pred_check
      _
    $region23: #{tpu_custom_call.1} parent=1 // pred_check_branch
      %52 = sbr.rel (0) target = $region25
    $region24: #{tpu_custom_call.1} parent=1 // pred_region
      %53 = dma.done [#allocation6], 768
    $region25: #{tpu_custom_call.1} parent=1 // pred_fallthru
      _
    %v54 = vld [vmem:[#allocation5] sm:$0xff]
    %v55 = vld [vmem:[#allocation5 + $0x8] sm:$0xf]
    %s56 = scalar_lea.vmem [#allocation5], 12
    %v57 = vld [vmem:[%s56] sm:$0xff]
    %v58 = vld [vmem:[%s56 + $0x8] sm:$0xf]
    %s59 = scalar_lea.vmem [#allocation5], 24
    %v60 = vld [vmem:[%s59] sm:$0xff]
    %v61 = vld [vmem:[%s59 + $0x8] sm:$0xf]
    %s62 = scalar_lea.vmem [#allocation5], 36
    %v63 = vld [vmem:[%s62] sm:$0xff]
    %v64 = vld [vmem:[%s62 + $0x8] sm:$0xf]
    %v65 = vld [vmem:[#allocation7] sm:$0xff]
    %v66 = vld [vmem:[#allocation7 + $0x8] sm:$0xf]
    %s67 = scalar_lea.vmem [#allocation7], 12
    %v68 = vld [vmem:[%s67] sm:$0xff]
    %v69 = vld [vmem:[%s67 + $0x8] sm:$0xf]
    %s70 = scalar_lea.vmem [#allocation7], 24
    %v71 = vld [vmem:[%s70] sm:$0xff]
    %v72 = vld [vmem:[%s70 + $0x8] sm:$0xf]
    %s73 = scalar_lea.vmem [#allocation7], 36
    %v74 = vld [vmem:[%s73] sm:$0xff]
    %v75 = vld [vmem:[%s73 + $0x8] sm:$0xf]
    %v76 = vmax.f32 %v54, %v65
    %v77 = vmax.f32 %v55, %v66
    %v78 = vmax.f32 %v57, %v68
    %v79 = vmax.f32 %v58, %v69
    %v80 = vmin.f32 %v60, %v71
    %v81 = vmin.f32 %v61, %v72
    %v82 = vmin.f32 %v63, %v74
    %v83 = vmin.f32 %v64, %v75
    %v84 = vsub.f32 %v80, %v76
    %v85 = vsub.f32 %v81, %v77
    %v86 = vmax.f32 %v84, 0.0
    %v87 = vmax.f32 %v85, 0.0
    %v88 = vsub.f32 %v82, %v78
    %v89 = vsub.f32 %v83, %v79
    %v90 = vmax.f32 %v88, 0.0
    %v91 = vmax.f32 %v89, 0.0
    %v92 = vmul.f32 %v86, %v90
    %v93 = vmul.f32 %v87, %v91
    %v94 = vsub.f32 %v60, %v54
    %v95 = vsub.f32 %v61, %v55
    %v96 = vsub.f32 %v63, %v57
    %v97 = vsub.f32 %v64, %v58
    %v98 = vmul.f32 %v94, %v96
    %v99 = vmul.f32 %v95, %v97
    %v100 = vmax.f32 %v98, 0.0
    %v101 = vmax.f32 %v99, 0.0
    %v102 = vsub.f32 %v71, %v65
    %v103 = vsub.f32 %v72, %v66
    %v104 = vsub.f32 %v74, %v68
    %v105 = vsub.f32 %v75, %v69
    %v106 = vmul.f32 %v102, %v104
    %v107 = vmul.f32 %v103, %v105
    %v108 = vmax.f32 %v106, 0.0
    %v109 = vmax.f32 %v107, 0.0
    %v110 = vadd.f32 %v100, %v108
    %v111 = vadd.f32 %v101, %v109
    %v112 = vsub.f32 %v110, %v92
    %v113 = vsub.f32 %v111, %v93
    %v114 = vadd.f32 %v112, 1e-09
    %v115 = vadd.f32 %v113, 1e-09
    %v116 = vrcp.pop %v114
    %v117 = vmul.f32 %v92, %v116
    %v118 = vrcp.pop %v115
    %v119 = vmul.f32 %v93, %v118
    %v120 = vld [vmem:[#allocation2] sm:$0xff]
    %v121 = vld [vmem:[#allocation2 + $0x8] sm:$0xf]
    %v122 = vmax.f32 %v120, 0.0
    %v123 = vmax.f32 %v121, 0.0
    %v124 = vmul.f32 %v120, %v117
    %v125 = vmul.f32 %v121, %v119
    %v126 = vsub.f32 %v122, %v124
    %v127 = vsub.f32 %v123, %v125
    %v128 = vand.u32 2147483647, %v120
    %v129 = vand.u32 2147483647, %v121
    %v130 = vsub.f32 0.0, %v128
    %v131 = vsub.f32 0.0, %v129
    %v132 = vmul.f32 %v130, 1.442695
    %v133 = vpow.pop %v132
    %v134 = vmul.f32 %v131, 1.442695
    %v135 = vpow.pop %v134
    %v136 = vadd.f32 %v133, 1.0
    %v137 = vlog2.pop %v136
    %v138 = vmul.f32 %v137, 0.6931472
    %v139 = vmul.f32 -0.5, %v133
    %v140 = vadd.f32 %v139, 1.0
    %v141 = vmul.f32 %v140, %v133
    %v142 = vand.u32 2147483647, %v133
    %vm143 = vcmp.lt.f32.partialorder %v142, 0.0004427343
    %v144 = vsel %vm143, %v141, %v138
    %v145 = vadd.f32 %v135, 1.0
    %v146 = vlog2.pop %v145
    %v147 = vmul.f32 %v146, 0.6931472
    %v148 = vmul.f32 -0.5, %v135
    %v149 = vadd.f32 %v148, 1.0
    %v150 = vmul.f32 %v149, %v135
    %v151 = vand.u32 2147483647, %v135
    %vm152 = vcmp.lt.f32.partialorder %v151, 0.0004427343
    %v153 = vsel %vm152, %v150, %v147
    %v154 = vadd.f32 %v126, %v144
    %v155 = vadd.f32 %v127, %v153
    %156 = vst [vmem:[#allocation8] sm:$0xff] %v154
    %157 = vst [vmem:[#allocation8 + $0x8] sm:$0xf] %v155
    // Predicated region
    $region26: #{tpu_custom_call.1} parent=1 // pred_check
      _
    $region27: #{tpu_custom_call.1} parent=1 // pred_check_branch
      %159 = sbr.rel (0) target = $region29
    $region28: #{tpu_custom_call.1} parent=1 // pred_region
      %s161 = ssub.s32 192, 192
      %162 = vsyncadd [#allocation4], %s161
      %s164 = sshll.u32 [#allocation8], 4
      %s165 = int_to_ptr.vmem [resolvable:$true] %s164
      %167 = dma.vmem_to_hbm [thread:$0]  %s165, 192, %s3, [#allocation4]
    $region29: #{tpu_custom_call.1} parent=1 // pred_fallthru
      _
    // Predicated region
    $region30: #{tpu_custom_call.1} parent=1 // pred_check
      _
    $region31: #{tpu_custom_call.1} parent=1 // pred_check_branch
      %169 = sbr.rel (0) target = $region33
    $region32: #{tpu_custom_call.1} parent=1 // pred_region
      %170 = dma.done [#allocation4], 192
    $region33: #{tpu_custom_call.1} parent=1 // pred_fallthru
      _
    %171 = vsyncpa [#allocation3], 1
    %172 = vsyncpa [#allocation6], 1
    %173 = vsyncpa [#allocation4], 1

</llo_original>
